<compile_context>
chip_gen: v5e
topology: v5e:2x2
jax: 0.10.0
libtpu: 0.0.40
codegen_flags: <defaults>
</compile_context>

<pallas_src>
import functools

import jax
import jax.numpy as jnp
from jax.experimental import pallas as pl
from jax.experimental.pallas import tpu as pltpu


# ---------------------------------------------------------------------------
# Kernels
# ---------------------------------------------------------------------------
def _linear_kernel_fused(x_ref, w_ref, b_ref, o_ref):
    """K fits in a single tile: no accumulator, no init/finalize phases."""
    acc = jnp.dot(x_ref[...], w_ref[...], preferred_element_type=jnp.float32)
    o_ref[...] = (acc + b_ref[...]).astype(o_ref.dtype)


def _linear_kernel_acc(x_ref, w_ref, b_ref, o_ref, acc_ref):
    """Multi-K-tile variant: f32 accumulator scratch, reduction axis last."""
    k = pl.program_id(2)

    @pl.when(k == 0)
    def _init():
        acc_ref[...] = jnp.zeros_like(acc_ref)

    # bf16 x bf16 -> f32 accumulate on the MXU.
    acc_ref[...] += jnp.dot(
        x_ref[...], w_ref[...], preferred_element_type=jnp.float32
    )

    @pl.when(k == pl.num_programs(2) - 1)
    def _finalize():
        # Bias add in f32; cast only at the store.
        o_ref[...] = (acc_ref[...] + b_ref[...]).astype(o_ref.dtype)


# ---------------------------------------------------------------------------
# Tiling helpers
# ---------------------------------------------------------------------------
def _round_up(x: int, m: int) -> int:
    return (x + m - 1) // m * m


def _largest_tile(dim: int, cap: int, align: int = 128) -> int:
    """Largest multiple of `align` that divides `dim` (itself a multiple of
    `align`) and is <= cap.  Avoids double-rounding the padded dims up to a
    fixed tile multiple."""
    cap = max(align, min(cap, dim))
    best = align
    t = align
    while t <= cap:
        if dim % t == 0:
            best = t
        t += align
    return best


def _vmem_limit_bytes() -> int:
    """Generation-aware VMEM budget: ~48 MiB on v7x (64 MiB physical),
    ~96 MiB on v5e/v6e (128 MiB physical)."""
    try:
        cap = int(pltpu.get_tpu_info().vmem_capacity_bytes)
    except Exception:  # pragma: no cover - conservative fallback
        cap = 64 * 1024 * 1024
    return max(16 * 1024 * 1024, min(cap * 3 // 4, 100 * 1024 * 1024))


# ---------------------------------------------------------------------------
# One-time weight packing (hoisted out of the per-call forward path)
# ---------------------------------------------------------------------------
def pack_linear_params(w, b):
    """w: (out_features, in_features) in PyTorch layout, b: (out_features,).

    Returns (w_t_packed, b_packed):
      w_t_packed: (K_pad, N_pad) bf16, 128-aligned transpose of w
      b_packed:   (1, N_pad) f32
    Padded rows/cols are zero, so they contribute nothing to the dot and the
    padded bias columns are zero (sliced off in the forward)."""
    n, k = w.shape
    kp = _round_up(k, 128)
    np_ = _round_up(n, 128)
    w_t = jnp.pad(jnp.asarray(w).T.astype(jnp.bfloat16), ((0, kp - k), (0, np_ - n)))
    b_p = jnp.pad(jnp.asarray(b).astype(jnp.float32), (0, np_ - n)).reshape(1, np_)
    return w_t, b_p


# ---------------------------------------------------------------------------
# Forward
# ---------------------------------------------------------------------------
@functools.partial(jax.jit, static_argnames=("out_features",))
def simple_embedding_forward(x, w_packed, b_packed, *, out_features):
    """x: (batch, in_features) -> (batch, out_features) in x.dtype."""
    m, k = x.shape
    kp, np_ = w_packed.shape
    assert kp % 128 == 0 and np_ % 128 == 0 and kp >= k
    assert b_packed.shape == (1, np_)
    out_dtype = x.dtype
    out_bytes = jnp.dtype(out_dtype).itemsize

    # --- M (batch): pad only to bf16 sublane packing (16), not 128.  For
    # small/moderate batch use the whole batch as one tile so the batch grid
    # axis disappears and W is streamed from HBM exactly once.
    if _round_up(m, 16) <= 512:
        mp = _round_up(m, 16)
        tm = mp
    else:
        mp = _round_up(m, 256)   # 256-aligned: full-width MXU issue on v6e/v7x
        tm = 256

    # --- K/N tiles: largest 128-multiple divisors of the already-padded dims
    # under generous caps (amortize per-step overhead, minimize k steps so the
    # accumulator RMW never binds the v5e store slot).  Worst case
    # (tm=256, tk=2048, tn=1024): 2x double-buffered bf16 inputs (~10.5 MiB)
    # + f32 acc (1 MiB) + output buffers stays well under the v7x budget.
    tk = _largest_tile(kp, 2048)
    tn = _largest_tile(np_, 1024)

    # --- v7x megacore: if both parallel axes would have a single block, split
    # N into >=2 blocks (when N is large enough) so both TensorCores get work.
    if mp // tm == 1 and np_ // tn == 1 and np_ >= 256:
        tn = _largest_tile(np_, np_ // 2)

    # Per-call input prep: cast + pad x only (XLA fuses cast+pad).
    x_p = x.astype(jnp.bfloat16)
    if (mp, kp) != (m, k):
        x_p = jnp.pad(x_p, ((0, mp - m), (0, kp - k)))

    gm, gn, gk = mp // tm, np_ // tn, kp // tk
    compiler_params = pltpu.CompilerParams(
        dimension_semantics=("parallel", "parallel") + (("arbitrary",) if gk > 1 else ()),
        vmem_limit_bytes=_vmem_limit_bytes(),
    )
    # Advisory cost: account for grid re-reads of x (per N block) and W
    # (per M block) at the padded shapes.
    cost = pl.CostEstimate(
        flops=2 * mp * kp * np_,
        transcendentals=0,
        bytes_accessed=(mp * kp * 2 * gn + kp * np_ * 2 * gm
                        + mp * np_ * out_bytes + np_ * 4),
    )
    out_shape = jax.ShapeDtypeStruct((mp, np_), out_dtype)

    if gk == 1:
        # K fits in one tile: fused kernel, no reduction axis, no scratch.
        out = pl.pallas_call(
            _linear_kernel_fused,
            out_shape=out_shape,
            grid=(gm, gn),
            in_specs=[
                pl.BlockSpec((tm, tk), lambda i, j: (i, 0)),
                pl.BlockSpec((tk, tn), lambda i, j: (0, j)),
                pl.BlockSpec((1, tn), lambda i, j: (0, j)),
            ],
            out_specs=pl.BlockSpec((tm, tn), lambda i, j: (i, j)),
            compiler_params=compiler_params,
            cost_estimate=cost,
        )(x_p, w_packed, b_packed)
    else:
        # General tiled reduction with f32 VMEM accumulator.
        # TODO(synk): if profiling ever shows exposed DMA on the W stream,
        # add pipeline_mode=pl.Buffered(3) to the W BlockSpec.
        out = pl.pallas_call(
            _linear_kernel_acc,
            out_shape=out_shape,
            grid=(gm, gn, gk),
            in_specs=[
                pl.BlockSpec((tm, tk), lambda i, j, kk: (i, kk)),
                pl.BlockSpec((tk, tn), lambda i, j, kk: (kk, j)),
                # Bias tied to the N tile only: stays VMEM-resident across i, k.
                pl.BlockSpec((1, tn), lambda i, j, kk: (0, j)),
            ],
            out_specs=pl.BlockSpec((tm, tn), lambda i, j, kk: (i, j)),
            scratch_shapes=[pltpu.VMEM((tm, tn), jnp.float32)],
            compiler_params=compiler_params,
            cost_estimate=cost,
        )(x_p, w_packed, b_packed)

    return out[:m, :out_features]


# ---------------------------------------------------------------------------
# Self-test
# ---------------------------------------------------------------------------
if __name__ == "__main__":
    # Shapes consistent with the module: batch=8, input_size=32, embedding_size=16.
    batch, input_size, embedding_size = 8, 32, 16

    key = jax.random.PRNGKey(0)
    kx, kw, kb = jax.random.split(key, 3)

    # Deterministic init mimicking nn.Linear's uniform(-1/sqrt(in), 1/sqrt(in)).
    bound = 1.0 / (input_size ** 0.5)
    # PyTorch weight layout: (embedding_size, input_size).
    w = jax.random.uniform(kw, (embedding_size, input_size), jnp.float32, -bound, bound)
    b = jax.random.uniform(kb, (embedding_size,), jnp.float32, -bound, bound)
    x = jax.random.normal(kx, (batch, input_size), jnp.float32)

    # Pack the (static) weights exactly once, outside the per-call path.
    w_packed, b_packed = pack_linear_params(w, b)

    y = jax.block_until_ready(
        simple_embedding_forward(x, w_packed, b_packed, out_features=embedding_size)
    )

    # Reference check (same math as nn.Linear forward).  Loose tolerance
    # because kernel operands are cast to bf16 (f32 accumulate).
    y_ref = x @ w.T + b
    assert y.shape == (batch, embedding_size)
    assert jnp.allclose(y, y_ref, atol=2e-2, rtol=2e-2), float(
        jnp.max(jnp.abs(y - y_ref))
    )

    print("KERNEL_OK")
</pallas_src>

<mosaic_0001>
module attributes {stable_mosaic.version = 11 : i64} {
  func.func @_linear_kernel_fused(%arg0: i32, %arg1: i32, %arg2: memref<16x128xbf16, #tpu.memory_space<vmem>>, %arg3: memref<128x128xbf16, #tpu.memory_space<vmem>>, %arg4: memref<1x128xf32, #tpu.memory_space<vmem>>, %arg5: memref<16x128xf32, #tpu.memory_space<vmem>>) attributes {dimension_semantics = [#tpu.dimension_semantics<parallel>, #tpu.dimension_semantics<parallel>], iteration_bounds = array<i64: 1, 1>, scalar_prefetch = 0 : i64, scratch_operands = 0 : i64, tpu.core_type = #tpu.core_type<tc>, window_params = [{transform_indices = @transform_0, window_bounds = array<i64: 16, 128>}, {transform_indices = @transform_1, window_bounds = array<i64: 128, 128>}, {transform_indices = @transform_2, window_bounds = array<i64: 1, 128>}, {transform_indices = @transform_3, window_bounds = array<i64: 16, 128>}]} {
    %c0 = arith.constant 0 : index
    %c0_0 = arith.constant 0 : index
    %0 = vector.load %arg2[%c0, %c0_0] : memref<16x128xbf16, #tpu.memory_space<vmem>>, vector<16x128xbf16>
    %c0_1 = arith.constant 0 : index
    %c0_2 = arith.constant 0 : index
    %1 = vector.load %arg3[%c0_1, %c0_2] : memref<128x128xbf16, #tpu.memory_space<vmem>>, vector<128x128xbf16>
    %cst = arith.constant dense<0.000000e+00> : vector<16x128xf32>
    %2 = tpu.matmul %0, %1, %cst {dimension_numbers = #tpu.dot_dimension_numbers<[1], [0], [0], [1], [0, 0, 1, 1], [], []>} : vector<16x128xbf16>, vector<128x128xbf16>, vector<16x128xf32> -> vector<16x128xf32>
    %c0_3 = arith.constant 0 : index
    %c0_4 = arith.constant 0 : index
    %3 = vector.load %arg4[%c0_3, %c0_4] : memref<1x128xf32, #tpu.memory_space<vmem>>, vector<1x128xf32>
    %4 = vector.broadcast %3 : vector<1x128xf32> to vector<16x128xf32>
    %5 = arith.addf %2, %4 : vector<16x128xf32>
    %c0_5 = arith.constant 0 : index
    %c0_6 = arith.constant 0 : index
    %6 = vector.load %arg5[%c0_5, %c0_6] : memref<16x128xf32, #tpu.memory_space<vmem>>, vector<16x128xf32>
    tpu.vector_store %arg5[%c0_5, %c0_6], %5 {strides = array<i32>} : memref<16x128xf32, #tpu.memory_space<vmem>>, vector<16x128xf32>,
    return
  }
  func.func @transform_0(%arg0: i32, %arg1: i32) -> (i32, i32) {
    %c0_i32 = arith.constant 0 : i32
    %c0_i32_0 = arith.constant 0 : i32
    return %arg0, %c0_i32 : i32, i32
  }
  func.func @transform_1(%arg0: i32, %arg1: i32) -> (i32, i32) {
    %c0_i32 = arith.constant 0 : i32
    %c0_i32_0 = arith.constant 0 : i32
    return %c0_i32, %arg1 : i32, i32
  }
  func.func @transform_2(%arg0: i32, %arg1: i32) -> (i32, i32) {
    %c0_i32 = arith.constant 0 : i32
    %c0_i32_0 = arith.constant 0 : i32
    return %c0_i32, %arg1 : i32, i32
  }
  func.func @transform_3(%arg0: i32, %arg1: i32) -> (i32, i32) {
    %c0_i32 = arith.constant 0 : i32
    return %arg0, %arg1 : i32, i32
  }
}

</mosaic_0001>

<llo_original>
// kernel: simple_embedding_forward.1
$region0: #{simple_embedding_forward.1}
  #allocation0 [shape = 'u32[]', space=smem, size = 0x4, offset = 0x4, fixed_abs, tag = 'smem constant byte address 0x4 - core index']
  #allocation1 [shape = 'u32[72,128]{1,0:T(1,128)}', space=vmem, size = 0x9000, scoped, tag = 'internal scratch']
  %s0 = inlined_call_operand.vmem [shape: bf16[16,128], index: 0, kind: input, shape index: {}]
  %s1 = inlined_call_operand.hbm [shape: bf16[128,128], index: 1, kind: input, shape index: {}]
  %s2 = inlined_call_operand.vmem [shape: f32[1,128], index: 2, kind: input, shape index: {}]
  %s3 = inlined_call_operand.vmem [shape: f32[16,128], index: 3, kind: output, shape index: {}]
  %s4 = sld [smem:[#allocation0]]
  $region26: #{simple_embedding_forward.1} parent=0
    _
  %s6 = ssub.s32 1, %s4
  %s7 = scalar_select 0, %s6, %s4
  $region1: #{simple_embedding_forward.1} parent=0
    #allocation2 [shape = 'u8[32768]{0}', space=vmem, size = 0x8000, scoped, tag = 'input window, operand 1, single buffered']
    #allocation3 [shape = 's32[1]{0}', space=sflag, size = 0x4, scoped, tag = 'scoped memory for simple_embedding_forward.1']
    %8 = vsyncpa [#allocation3], 0
    // Predicated region
    $region2: #{simple_embedding_forward.1} parent=1 // pred_check
      _
    $region3: #{simple_embedding_forward.1} parent=1 // pred_check_branch
      %10 = sbr.rel (0) target = $region5
    $region4: #{simple_embedding_forward.1} parent=1 // pred_region
      _
    $region5: #{simple_embedding_forward.1} parent=1 // pred_fallthru
      _
    // Predicated region
    $region6: #{simple_embedding_forward.1} parent=1 // pred_check
      _
    $region7: #{simple_embedding_forward.1} parent=1 // pred_check_branch
      %12 = sbr.rel (0) target = $region9
    $region8: #{simple_embedding_forward.1} parent=1 // pred_region
      %14 = vsyncadd [#allocation3], 0
      %s15 = sshll.u32 %s1, 4
      %s16 = int_to_ptr.hbm [resolvable:$true] %s15
      %s17 = sshll.u32 [#allocation2], 4
      %s18 = int_to_ptr.vmem [resolvable:$true] %s17
      %23 = dma.hbm_to_vmem [thread:$0]  %s16, 1024, %s18, [#allocation3], 64, 64, 4
    $region9: #{simple_embedding_forward.1} parent=1 // pred_fallthru
      _
    // Predicated region
    $region10: #{simple_embedding_forward.1} parent=1 // pred_check
      _
    $region11: #{simple_embedding_forward.1} parent=1 // pred_check_branch
      %25 = sbr.rel (0) target = $region13
    $region12: #{simple_embedding_forward.1} parent=1 // pred_region
      _
    $region13: #{simple_embedding_forward.1} parent=1 // pred_fallthru
      _
    // Predicated region
    $region14: #{simple_embedding_forward.1} parent=1 // pred_check
      _
    $region15: #{simple_embedding_forward.1} parent=1 // pred_check_branch
      %27 = sbr.rel (0) target = $region17
    $region16: #{simple_embedding_forward.1} parent=1 // pred_region
      %29 = dma.done [#allocation3], 1024
    $region17: #{simple_embedding_forward.1} parent=1 // pred_fallthru
      _
    %v30 = vld [vmem:[%s0] sm:$0xf]
    %v31 = vld [vmem:[%s0 + $0x4] sm:$0xf]
    %v32 = vld [vmem:[#allocation2] sm:$0xf]
    %v33 = vld [vmem:[#allocation2 + $0x4] sm:$0xf]
    %v34 = vld [vmem:[#allocation2 + $0x8] sm:$0xf]
    %v35 = vld [vmem:[#allocation2 + $0xc] sm:$0xf]
    %v36 = vld [vmem:[#allocation2 + $0x10] sm:$0xf]
    %v37 = vld [vmem:[#allocation2 + $0x14] sm:$0xf]
    %v38 = vld [vmem:[#allocation2 + $0x18] sm:$0xf]
    %v39 = vld [vmem:[#allocation2 + $0x1c] sm:$0xf]
    %v40 = vld [vmem:[#allocation2 + $0x20] sm:$0xf]
    %v41 = vld [vmem:[#allocation2 + $0x24] sm:$0xf]
    %v42 = vld [vmem:[#allocation2 + $0x28] sm:$0xf]
    %v43 = vld [vmem:[#allocation2 + $0x2c] sm:$0xf]
    %v44 = vld [vmem:[#allocation2 + $0x30] sm:$0xf]
    %v45 = vld [vmem:[#allocation2 + $0x34] sm:$0xf]
    %v46 = vld [vmem:[#allocation2 + $0x38] sm:$0xf]
    %v47 = vld [vmem:[#allocation2 + $0x3c] sm:$0xf]
    %v48 = vld [vmem:[%s2] sm:$0x1]
    %v50 = vperm.slane %v48, 0
    %v54 = vunpack.c.l.b16 %v30
    %v55 = vunpack.c.l.b16 %v31
    %v56 = vpack.c.b16 %v55, %v54
    %v74 = vunpack.c.l.b16 %v32
    %v75 = vunpack.c.l.b16 %v33
    %v76 = vunpack.c.l.b16 %v34
    %v77 = vunpack.c.l.b16 %v35
    %v78 = vunpack.c.l.b16 %v36
    %v79 = vunpack.c.l.b16 %v37
    %v80 = vunpack.c.l.b16 %v38
    %v81 = vunpack.c.l.b16 %v39
    %v82 = vunpack.c.l.b16 %v40
    %v83 = vunpack.c.l.b16 %v41
    %v84 = vunpack.c.l.b16 %v42
    %v85 = vunpack.c.l.b16 %v43
    %v86 = vunpack.c.l.b16 %v44
    %v87 = vunpack.c.l.b16 %v45
    %v88 = vunpack.c.l.b16 %v46
    %v89 = vunpack.c.l.b16 %v47
    %v90 = vpack.c.b16 %v75, %v74
    %v91 = vpack.c.b16 %v77, %v76
    %v92 = vpack.c.b16 %v79, %v78
    %v93 = vpack.c.b16 %v81, %v80
    %v94 = vpack.c.b16 %v83, %v82
    %v95 = vpack.c.b16 %v85, %v84
    %v96 = vpack.c.b16 %v87, %v86
    %v97 = vpack.c.b16 %v89, %v88
    %106 = vmatpush.bf16.msra.mxu0 %v97
    %107 = vmatpush.bf16.msra.mxu0 %v96
    %108 = vmatpush.bf16.msra.mxu0 %v95
    %109 = vmatpush.bf16.msra.mxu0 %v94
    %110 = vmatpush.bf16.msra.mxu0 %v93
    %111 = vmatpush.bf16.msra.mxu0 %v92
    %112 = vmatpush.bf16.msra.mxu0 %v91
    %113 = vmatpush.bf16.msra.mxu0 %v90
    %114 = vmatmul.bf16.gmra.mxu0 %v56
    %v115 = vpop.f32.mrf.mxu0
    %v116 = vadd.f32 %v50, %v115
    %v117 = vpop.f32.mrf.mxu0
    %v118 = vadd.f32 %v50, %v117
    %119 = vdwg.mxu0
    %120 = vst [vmem:[%s3] sm:$0xff] %v116
    %121 = vst [vmem:[%s3 + $0x8] sm:$0xff] %v118
    // Predicated region
    $region18: #{simple_embedding_forward.1} parent=1 // pred_check
      _
    $region19: #{simple_embedding_forward.1} parent=1 // pred_check_branch
      %123 = sbr.rel (0) target = $region21
    $region20: #{simple_embedding_forward.1} parent=1 // pred_region
      _
    $region21: #{simple_embedding_forward.1} parent=1 // pred_fallthru
      _
    // Predicated region
    $region22: #{simple_embedding_forward.1} parent=1 // pred_check
      _
    $region23: #{simple_embedding_forward.1} parent=1 // pred_check_branch
      %125 = sbr.rel (0) target = $region25
    $region24: #{simple_embedding_forward.1} parent=1 // pred_region
      _
    $region25: #{simple_embedding_forward.1} parent=1 // pred_fallthru
      _
    %126 = vsyncpa [#allocation3], 1

</llo_original>
